<compile_context>
chip_gen: v5e
topology: v5e:2x2
jax: 0.10.0
libtpu: 0.0.40
codegen_flags: <defaults>
</compile_context>

<pallas_src>
import functools

import jax
import jax.numpy as jnp
from jax.experimental import pallas as pl
from jax.experimental.pallas import tpu as pltpu


def _mlp_fused_kernel(*refs, num_layers, activate_final, use_bf16):
    """refs = (x_ref, w0, b0, w1, b1, ..., out_ref).

    x_ref : (tile_n, Cin)       -- native (N, C) layout block
    w_l   : (Cout_l, Cin_l)     -- full weight, VMEM-resident
    b_l   : (Cout_l, 1)         -- broadcast over lanes
    out   : (Cout_last, tile_n) -- lane-dense (points on the 128-lane axis)
    """
    x_ref = refs[0]
    out_ref = refs[-1]
    param_refs = refs[1:-1]
    cdt = jnp.bfloat16 if use_bf16 else jnp.float32

    h = x_ref[...].astype(cdt)                               # (tile_n, Cin)
    for li in range(num_layers):                             # unrolled layers
        w = param_refs[2 * li][...].astype(cdt)              # (Cout, Cin)
        b = param_refs[2 * li + 1][...].astype(jnp.float32)  # (Cout, 1)
        if li == 0:
            # Contract Cin of both operands: (Cout,Cin) x (tile_n,Cin)
            #   -> (Cout, tile_n).  Re-orients the x tile on the MXU feed;
            # no wrapper transpose/pad and no extra HBM traffic.
            h = jax.lax.dot_general(w, h, (((1,), (1,)), ((), ())),
                                    preferred_element_type=jnp.float32)
        else:
            # (Cout,Cin) @ (Cin, tile_n) -> (Cout, tile_n), f32 accumulate.
            h = jnp.dot(w, h, preferred_element_type=jnp.float32)
        h = h + b
        if (li != num_layers - 1) or activate_final:
            h = jnp.maximum(h, 0.0)                          # ReLU
        if use_bf16 and li != num_layers - 1:
            h = h.astype(cdt)
    out_ref[...] = h.astype(out_ref.dtype)


def _choose_tile_n(n):
    """Largest lane-aligned tile keeping enough grid blocks for pipelining
    and for both v7x TensorCores; capped at 1024 (v5e spill awareness)."""
    n_lanes = max(128, pl.cdiv(n, 128) * 128)
    for cand in (1024, 512, 256, 128):       # >= 4 blocks: overlap + 2 TCs
        if pl.cdiv(n_lanes, cand) >= 4:
            return cand
    for cand in (512, 256, 128):             # >= 2 blocks: both v7x TCs busy
        if pl.cdiv(n_lanes, cand) >= 2:
            return cand
    return min(n_lanes, 1024)                # tiny N: single block


def _vmem_tile_bytes(rows, cols, dtype):
    """(8,128)-tiled VMEM footprint of one buffer."""
    return (pl.cdiv(rows, 8) * 8) * (pl.cdiv(cols, 128) * 128) * jnp.dtype(dtype).itemsize


def mlp_forward(x, params, *, activate_final=False, tile_n=None,
                use_bf16=False, return_transposed=False):
    """x: (N, Cin); params: list of (W, b) with W (out, in), b (out,).

    Returns (N, Cout_last) (or (Cout_last, N) if return_transposed).
    The entire MLP runs in a single pallas_call; intermediates never touch HBM.
    """
    n, cin = x.shape
    num_layers = len(params)
    cout = params[-1][0].shape[0]
    out_dtype = x.dtype

    if tile_n is None:
        tile_n = _choose_tile_n(n)
    assert tile_n % 128 == 0 and tile_n >= 128, "tile_n must be a multiple of 128"
    grid_n = pl.cdiv(n, tile_n)              # ragged tail handled by Pallas OOB masking

    # Flatten (W, b) pairs; biases reshaped to (out, 1) for lane broadcast.
    flat_inputs = [x]
    for w, b in params:
        flat_inputs.append(w)
        flat_inputs.append(b.reshape(w.shape[0], 1))

    # VMEM budget: double-buffered x/out tiles + live activations + params.
    act_w = max([cin] + [w.shape[0] for w, _ in params])
    param_bytes = sum(_vmem_tile_bytes(w.shape[0], w.shape[1], w.dtype)
                      + _vmem_tile_bytes(w.shape[0], 1, b.dtype) for w, b in params)
    vmem_need = (2 * _vmem_tile_bytes(tile_n, cin, x.dtype)
                 + 2 * _vmem_tile_bytes(cout, tile_n, out_dtype)
                 + 2 * _vmem_tile_bytes(act_w, tile_n, jnp.float32)
                 + 2 * param_bytes)
    vmem_limit = int(min(max(2 * vmem_need + (4 << 20), 32 << 20), 64 << 20))

    flops = 2 * n * sum(w.shape[0] * w.shape[1] for w, _ in params)
    bytes_accessed = (x.size * x.dtype.itemsize
                      + n * cout * jnp.dtype(out_dtype).itemsize
                      + sum(w.size * w.dtype.itemsize + b.size * b.dtype.itemsize
                            for w, b in params))
    cost = pl.CostEstimate(flops=int(flops), transcendentals=0,
                           bytes_accessed=int(bytes_accessed))

    kernel = functools.partial(
        _mlp_fused_kernel, num_layers=num_layers,
        activate_final=activate_final, use_bf16=use_bf16)

    def _make_in_specs(single_buffer_weights):
        # x: native (N, Cin) layout, tiled along the point axis.
        specs = [pl.BlockSpec((tile_n, cin), lambda i: (i, 0))]
        extra = {"pipeline_mode": pl.Buffered(1)} if single_buffer_weights else {}
        for w, _ in params:
            co, ci = w.shape
            # Constant-index full-array blocks: weights/biases stay
            # VMEM-resident across the whole grid; Buffered(1) avoids
            # double-buffering them (v7x 64 MiB VMEM headroom).
            specs.append(pl.BlockSpec((co, ci), lambda i: (0, 0), **extra))
            specs.append(pl.BlockSpec((co, 1), lambda i: (0, 0), **extra))
        return specs

    def _run(in_specs):
        return pl.pallas_call(
            kernel,
            out_shape=jax.ShapeDtypeStruct((cout, n), out_dtype),
            grid_spec=pltpu.PrefetchScalarGridSpec(
                num_scalar_prefetch=0,
                grid=(grid_n,),
                in_specs=in_specs,
                # Lane-dense output block (points on the lane axis): unmasked
                # full-width stores; do NOT switch to (tile_n, cout).
                out_specs=pl.BlockSpec((cout, tile_n), lambda i: (0, i)),
            ),
            compiler_params=pltpu.CompilerParams(
                dimension_semantics=("parallel",),
                vmem_limit_bytes=vmem_limit),
            cost_estimate=cost,
        )(*flat_inputs)

    try:
        out_t = _run(_make_in_specs(True))
    except Exception:
        # Fallback for environments without pipeline_mode / Buffered support.
        out_t = _run(_make_in_specs(False))

    if return_transposed:
        return out_t                      # (Cout, N) lane-dense slab
    return out_t.T                        # (N, Cout) to match the PyTorch module


def init_mlp_params(key, input_dim, hidden_dim, output_dim, num_layers,
                    bias=True, dtype=jnp.float32):
    """Mirrors MLP.__init__: num_layers hidden layers + one output layer.

    Weights: xavier_normal_ (gain=1), PyTorch layout (out_features, in_features).
    Biases: normal(0, 0.001).
    """
    dims = [(input_dim, hidden_dim)]
    for _ in range(num_layers - 1):
        dims.append((hidden_dim, hidden_dim))
    dims.append((hidden_dim, output_dim))

    params = []
    for fan_in, fan_out in dims:
        key, wk, bk = jax.random.split(key, 3)
        std = (2.0 / (fan_in + fan_out)) ** 0.5       # xavier normal, gain=1
        w = std * jax.random.normal(wk, (fan_out, fan_in), dtype=dtype)
        if bias:
            b = 0.001 * jax.random.normal(bk, (fan_out,), dtype=dtype)
        else:
            b = jnp.zeros((fan_out,), dtype=dtype)
        params.append((w, b))
    return params


if __name__ == "__main__":
    key = jax.random.PRNGKey(0)
    k_x, k_p, k_x2 = jax.random.split(key, 3)

    # Small shapes: N points with input_dim features each.
    N, input_dim, hidden_dim, output_dim, num_layers = 128, 16, 32, 8, 3

    x = jax.random.normal(k_x, (N, input_dim), dtype=jnp.float32)
    params = init_mlp_params(k_p, input_dim, hidden_dim, output_dim, num_layers)

    def ref_mlp(xv):
        # Plain-JAX reference (PyTorch layout => y = x @ W.T + b).
        h = xv
        for li, (w, b) in enumerate(params):
            h = h @ w.T + b
            if li != len(params) - 1:
                h = jnp.maximum(h, 0.0)
        return h

    out = jax.block_until_ready(mlp_forward(x, params, activate_final=False))
    assert out.shape == (N, output_dim)
    assert jnp.allclose(out, ref_mlp(x), atol=1e-5, rtol=1e-5)

    # Ragged / multi-tile path: N not a multiple of the lane width.
    N2 = 300
    x2 = jax.random.normal(k_x2, (N2, input_dim), dtype=jnp.float32)
    out2 = jax.block_until_ready(
        mlp_forward(x2, params, activate_final=False, tile_n=128))
    assert out2.shape == (N2, output_dim)
    assert jnp.allclose(out2, ref_mlp(x2), atol=1e-5, rtol=1e-5)

    print("KERNEL_OK")
</pallas_src>

<mosaic_0001>
module attributes {stable_mosaic.version = 11 : i64} {
  func.func @_mlp_fused_kernel(%arg0: i32, %arg1: memref<128x16xf32, #tpu.memory_space<vmem>>, %arg2: memref<32x16xf32, #tpu.memory_space<vmem>>, %arg3: memref<32x1xf32, #tpu.memory_space<vmem>>, %arg4: memref<32x32xf32, #tpu.memory_space<vmem>>, %arg5: memref<32x1xf32, #tpu.memory_space<vmem>>, %arg6: memref<32x32xf32, #tpu.memory_space<vmem>>, %arg7: memref<32x1xf32, #tpu.memory_space<vmem>>, %arg8: memref<8x32xf32, #tpu.memory_space<vmem>>, %arg9: memref<8x1xf32, #tpu.memory_space<vmem>>, %arg10: memref<8x128xf32, #tpu.memory_space<vmem>>) attributes {dimension_semantics = [#tpu.dimension_semantics<parallel>], iteration_bounds = array<i64: 1>, scalar_prefetch = 0 : i64, scratch_operands = 0 : i64, tpu.core_type = #tpu.core_type<tc>, window_params = [{transform_indices = @transform_0, window_bounds = array<i64: 128, 16>}, {pipeline_mode = #tpu.pipeline_mode<synchronous>, transform_indices = @transform_1, window_bounds = array<i64: 32, 16>}, {pipeline_mode = #tpu.pipeline_mode<synchronous>, transform_indices = @transform_2, window_bounds = array<i64: 32, 1>}, {pipeline_mode = #tpu.pipeline_mode<synchronous>, transform_indices = @transform_3, window_bounds = array<i64: 32, 32>}, {pipeline_mode = #tpu.pipeline_mode<synchronous>, transform_indices = @transform_4, window_bounds = array<i64: 32, 1>}, {pipeline_mode = #tpu.pipeline_mode<synchronous>, transform_indices = @transform_5, window_bounds = array<i64: 32, 32>}, {pipeline_mode = #tpu.pipeline_mode<synchronous>, transform_indices = @transform_6, window_bounds = array<i64: 32, 1>}, {pipeline_mode = #tpu.pipeline_mode<synchronous>, transform_indices = @transform_7, window_bounds = array<i64: 8, 32>}, {pipeline_mode = #tpu.pipeline_mode<synchronous>, transform_indices = @transform_8, window_bounds = array<i64: 8, 1>}, {transform_indices = @transform_9, window_bounds = array<i64: 8, 128>}]} {
    %c0 = arith.constant 0 : index
    %c0_0 = arith.constant 0 : index
    %0 = vector.load %arg1[%c0, %c0_0] : memref<128x16xf32, #tpu.memory_space<vmem>>, vector<128x16xf32>
    %c0_1 = arith.constant 0 : index
    %c0_2 = arith.constant 0 : index
    %1 = vector.load %arg2[%c0_1, %c0_2] : memref<32x16xf32, #tpu.memory_space<vmem>>, vector<32x16xf32>
    %c0_3 = arith.constant 0 : index
    %c0_4 = arith.constant 0 : index
    %2 = vector.load %arg3[%c0_3, %c0_4] : memref<32x1xf32, #tpu.memory_space<vmem>>, vector<32x1xf32>
    %cst = arith.constant dense<0.000000e+00> : vector<32x128xf32>
    %3 = tpu.matmul %1, %0, %cst {dimension_numbers = #tpu.dot_dimension_numbers<[1], [1], [0], [0], [0, 0, 1, 0], [], []>} : vector<32x16xf32>, vector<128x16xf32>, vector<32x128xf32> -> vector<32x128xf32>
    %4 = vector.broadcast %2 : vector<32x1xf32> to vector<32x128xf32>
    %5 = arith.addf %3, %4 : vector<32x128xf32>
    %cst_5 = arith.constant 0.000000e+00 : f32
    %6 = vector.broadcast %cst_5 : f32 to vector<32x128xf32>
    %7 = arith.maximumf %5, %6 : vector<32x128xf32>
    %c0_6 = arith.constant 0 : index
    %c0_7 = arith.constant 0 : index
    %8 = vector.load %arg4[%c0_6, %c0_7] : memref<32x32xf32, #tpu.memory_space<vmem>>, vector<32x32xf32>
    %c0_8 = arith.constant 0 : index
    %c0_9 = arith.constant 0 : index
    %9 = vector.load %arg5[%c0_8, %c0_9] : memref<32x1xf32, #tpu.memory_space<vmem>>, vector<32x1xf32>
    %cst_10 = arith.constant dense<0.000000e+00> : vector<32x128xf32>
    %10 = tpu.matmul %8, %7, %cst_10 {dimension_numbers = #tpu.dot_dimension_numbers<[1], [0], [0], [1], [0, 0, 1, 1], [], []>} : vector<32x32xf32>, vector<32x128xf32>, vector<32x128xf32> -> vector<32x128xf32>
    %11 = vector.broadcast %9 : vector<32x1xf32> to vector<32x128xf32>
    %12 = arith.addf %10, %11 : vector<32x128xf32>
    %cst_11 = arith.constant 0.000000e+00 : f32
    %13 = vector.broadcast %cst_11 : f32 to vector<32x128xf32>
    %14 = arith.maximumf %12, %13 : vector<32x128xf32>
    %c0_12 = arith.constant 0 : index
    %c0_13 = arith.constant 0 : index
    %15 = vector.load %arg6[%c0_12, %c0_13] : memref<32x32xf32, #tpu.memory_space<vmem>>, vector<32x32xf32>
    %c0_14 = arith.constant 0 : index
    %c0_15 = arith.constant 0 : index
    %16 = vector.load %arg7[%c0_14, %c0_15] : memref<32x1xf32, #tpu.memory_space<vmem>>, vector<32x1xf32>
    %cst_16 = arith.constant dense<0.000000e+00> : vector<32x128xf32>
    %17 = tpu.matmul %15, %14, %cst_16 {dimension_numbers = #tpu.dot_dimension_numbers<[1], [0], [0], [1], [0, 0, 1, 1], [], []>} : vector<32x32xf32>, vector<32x128xf32>, vector<32x128xf32> -> vector<32x128xf32>
    %18 = vector.broadcast %16 : vector<32x1xf32> to vector<32x128xf32>
    %19 = arith.addf %17, %18 : vector<32x128xf32>
    %cst_17 = arith.constant 0.000000e+00 : f32
    %20 = vector.broadcast %cst_17 : f32 to vector<32x128xf32>
    %21 = arith.maximumf %19, %20 : vector<32x128xf32>
    %c0_18 = arith.constant 0 : index
    %c0_19 = arith.constant 0 : index
    %22 = vector.load %arg8[%c0_18, %c0_19] : memref<8x32xf32, #tpu.memory_space<vmem>>, vector<8x32xf32>
    %c0_20 = arith.constant 0 : index
    %c0_21 = arith.constant 0 : index
    %23 = vector.load %arg9[%c0_20, %c0_21] : memref<8x1xf32, #tpu.memory_space<vmem>>, vector<8x1xf32>
    %cst_22 = arith.constant dense<0.000000e+00> : vector<8x128xf32>
    %24 = tpu.matmul %22, %21, %cst_22 {dimension_numbers = #tpu.dot_dimension_numbers<[1], [0], [0], [1], [0, 0, 1, 1], [], []>} : vector<8x32xf32>, vector<32x128xf32>, vector<8x128xf32> -> vector<8x128xf32>
    %25 = vector.broadcast %23 : vector<8x1xf32> to vector<8x128xf32>
    %26 = arith.addf %24, %25 : vector<8x128xf32>
    %c0_23 = arith.constant 0 : index
    %c0_24 = arith.constant 0 : index
    %27 = vector.load %arg10[%c0_23, %c0_24] : memref<8x128xf32, #tpu.memory_space<vmem>>, vector<8x128xf32>
    tpu.vector_store %arg10[%c0_23, %c0_24], %26 {strides = array<i32>} : memref<8x128xf32, #tpu.memory_space<vmem>>, vector<8x128xf32>,
    return
  }
  func.func @transform_0(%arg0: i32) -> (i32, i32) {
    %c0_i32 = arith.constant 0 : i32
    %c0_i32_0 = arith.constant 0 : i32
    return %arg0, %c0_i32 : i32, i32
  }
  func.func @transform_1(%arg0: i32) -> (i32, i32) {
    %c0_i32 = arith.constant 0 : i32
    %c0_i32_0 = arith.constant 0 : i32
    %c0_i32_1 = arith.constant 0 : i32
    return %c0_i32, %c0_i32_0 : i32, i32
  }
  func.func @transform_2(%arg0: i32) -> (i32, i32) {
    %c0_i32 = arith.constant 0 : i32
    %c0_i32_0 = arith.constant 0 : i32
    %c0_i32_1 = arith.constant 0 : i32
    return %c0_i32, %c0_i32_0 : i32, i32
  }
  func.func @transform_3(%arg0: i32) -> (i32, i32) {
    %c0_i32 = arith.constant 0 : i32
    %c0_i32_0 = arith.constant 0 : i32
    %c0_i32_1 = arith.constant 0 : i32
    return %c0_i32, %c0_i32_0 : i32, i32
  }
  func.func @transform_4(%arg0: i32) -> (i32, i32) {
    %c0_i32 = arith.constant 0 : i32
    %c0_i32_0 = arith.constant 0 : i32
    %c0_i32_1 = arith.constant 0 : i32
    return %c0_i32, %c0_i32_0 : i32, i32
  }
  func.func @transform_5(%arg0: i32) -> (i32, i32) {
    %c0_i32 = arith.constant 0 : i32
    %c0_i32_0 = arith.constant 0 : i32
    %c0_i32_1 = arith.constant 0 : i32
    return %c0_i32, %c0_i32_0 : i32, i32
  }
  func.func @transform_6(%arg0: i32) -> (i32, i32) {
    %c0_i32 = arith.constant 0 : i32
    %c0_i32_0 = arith.constant 0 : i32
    %c0_i32_1 = arith.constant 0 : i32
    return %c0_i32, %c0_i32_0 : i32, i32
  }
  func.func @transform_7(%arg0: i32) -> (i32, i32) {
    %c0_i32 = arith.constant 0 : i32
    %c0_i32_0 = arith.constant 0 : i32
    %c0_i32_1 = arith.constant 0 : i32
    return %c0_i32, %c0_i32_0 : i32, i32
  }
  func.func @transform_8(%arg0: i32) -> (i32, i32) {
    %c0_i32 = arith.constant 0 : i32
    %c0_i32_0 = arith.constant 0 : i32
    %c0_i32_1 = arith.constant 0 : i32
    return %c0_i32, %c0_i32_0 : i32, i32
  }
  func.func @transform_9(%arg0: i32) -> (i32, i32) {
    %c0_i32 = arith.constant 0 : i32
    %c0_i32_0 = arith.constant 0 : i32
    return %c0_i32, %arg0 : i32, i32
  }
}

module attributes {stable_mosaic.version = 11 : i64} {
  func.func @_mlp_fused_kernel(%arg0: i32, %arg1: memref<128x16xf32, #tpu.memory_space<vmem>>, %arg2: memref<32x16xf32, #tpu.memory_space<vmem>>, %arg3: memref<32x1xf32, #tpu.memory_space<vmem>>, %arg4: memref<32x32xf32, #tpu.memory_space<vmem>>, %arg5: memref<32x1xf32, #tpu.memory_space<vmem>>, %arg6: memref<32x32xf32, #tpu.memory_space<vmem>>, %arg7: memref<32x1xf32, #tpu.memory_space<vmem>>, %arg8: memref<8x32xf32, #tpu.memory_space<vmem>>, %arg9: memref<8x1xf32, #tpu.memory_space<vmem>>, %arg10: memref<8x128xf32, #tpu.memory_space<vmem>>) attributes {dimension_semantics = [#tpu.dimension_semantics<parallel>], iteration_bounds = array<i64: 1>, scalar_prefetch = 0 : i64, scratch_operands = 0 : i64, tpu.core_type = #tpu.core_type<tc>, window_params = [{transform_indices = @transform_0, window_bounds = array<i64: 128, 16>}, {pipeline_mode = #tpu.pipeline_mode<synchronous>, transform_indices = @transform_1, window_bounds = array<i64: 32, 16>}, {pipeline_mode = #tpu.pipeline_mode<synchronous>, transform_indices = @transform_2, window_bounds = array<i64: 32, 1>}, {pipeline_mode = #tpu.pipeline_mode<synchronous>, transform_indices = @transform_3, window_bounds = array<i64: 32, 32>}, {pipeline_mode = #tpu.pipeline_mode<synchronous>, transform_indices = @transform_4, window_bounds = array<i64: 32, 1>}, {pipeline_mode = #tpu.pipeline_mode<synchronous>, transform_indices = @transform_5, window_bounds = array<i64: 32, 32>}, {pipeline_mode = #tpu.pipeline_mode<synchronous>, transform_indices = @transform_6, window_bounds = array<i64: 32, 1>}, {pipeline_mode = #tpu.pipeline_mode<synchronous>, transform_indices = @transform_7, window_bounds = array<i64: 8, 32>}, {pipeline_mode = #tpu.pipeline_mode<synchronous>, transform_indices = @transform_8, window_bounds = array<i64: 8, 1>}, {transform_indices = @transform_9, window_bounds = array<i64: 8, 128>}]} {
    %c0 = arith.constant 0 : index
    %c0_0 = arith.constant 0 : index
    %0 = vector.load %arg1[%c0, %c0_0] : memref<128x16xf32, #tpu.memory_space<vmem>>, vector<128x16xf32>
    %c0_1 = arith.constant 0 : index
    %c0_2 = arith.constant 0 : index
    %1 = vector.load %arg2[%c0_1, %c0_2] : memref<32x16xf32, #tpu.memory_space<vmem>>, vector<32x16xf32>
    %c0_3 = arith.constant 0 : index
    %c0_4 = arith.constant 0 : index
    %2 = vector.load %arg3[%c0_3, %c0_4] : memref<32x1xf32, #tpu.memory_space<vmem>>, vector<32x1xf32>
    %cst = arith.constant dense<0.000000e+00> : vector<32x128xf32>
    %3 = tpu.matmul %1, %0, %cst {dimension_numbers = #tpu.dot_dimension_numbers<[1], [1], [0], [0], [0, 0, 1, 0], [], []>} : vector<32x16xf32>, vector<128x16xf32>, vector<32x128xf32> -> vector<32x128xf32>
    %4 = vector.broadcast %2 : vector<32x1xf32> to vector<32x128xf32>
    %5 = arith.addf %3, %4 : vector<32x128xf32>
    %cst_5 = arith.constant 0.000000e+00 : f32
    %6 = vector.broadcast %cst_5 : f32 to vector<32x128xf32>
    %7 = arith.maximumf %5, %6 : vector<32x128xf32>
    %c0_6 = arith.constant 0 : index
    %c0_7 = arith.constant 0 : index
    %8 = vector.load %arg4[%c0_6, %c0_7] : memref<32x32xf32, #tpu.memory_space<vmem>>, vector<32x32xf32>
    %c0_8 = arith.constant 0 : index
    %c0_9 = arith.constant 0 : index
    %9 = vector.load %arg5[%c0_8, %c0_9] : memref<32x1xf32, #tpu.memory_space<vmem>>, vector<32x1xf32>
    %cst_10 = arith.constant dense<0.000000e+00> : vector<32x128xf32>
    %10 = tpu.matmul %8, %7, %cst_10 {dimension_numbers = #tpu.dot_dimension_numbers<[1], [0], [0], [1], [0, 0, 1, 1], [], []>} : vector<32x32xf32>, vector<32x128xf32>, vector<32x128xf32> -> vector<32x128xf32>
    %11 = vector.broadcast %9 : vector<32x1xf32> to vector<32x128xf32>
    %12 = arith.addf %10, %11 : vector<32x128xf32>
    %cst_11 = arith.constant 0.000000e+00 : f32
    %13 = vector.broadcast %cst_11 : f32 to vector<32x128xf32>
    %14 = arith.maximumf %12, %13 : vector<32x128xf32>
    %c0_12 = arith.constant 0 : index
    %c0_13 = arith.constant 0 : index
    %15 = vector.load %arg6[%c0_12, %c0_13] : memref<32x32xf32, #tpu.memory_space<vmem>>, vector<32x32xf32>
    %c0_14 = arith.constant 0 : index
    %c0_15 = arith.constant 0 : index
    %16 = vector.load %arg7[%c0_14, %c0_15] : memref<32x1xf32, #tpu.memory_space<vmem>>, vector<32x1xf32>
    %cst_16 = arith.constant dense<0.000000e+00> : vector<32x128xf32>
    %17 = tpu.matmul %15, %14, %cst_16 {dimension_numbers = #tpu.dot_dimension_numbers<[1], [0], [0], [1], [0, 0, 1, 1], [], []>} : vector<32x32xf32>, vector<32x128xf32>, vector<32x128xf32> -> vector<32x128xf32>
    %18 = vector.broadcast %16 : vector<32x1xf32> to vector<32x128xf32>
    %19 = arith.addf %17, %18 : vector<32x128xf32>
    %cst_17 = arith.constant 0.000000e+00 : f32
    %20 = vector.broadcast %cst_17 : f32 to vector<32x128xf32>
    %21 = arith.maximumf %19, %20 : vector<32x128xf32>
    %c0_18 = arith.constant 0 : index
    %c0_19 = arith.constant 0 : index
    %22 = vector.load %arg8[%c0_18, %c0_19] : memref<8x32xf32, #tpu.memory_space<vmem>>, vector<8x32xf32>
    %c0_20 = arith.constant 0 : index
    %c0_21 = arith.constant 0 : index
    %23 = vector.load %arg9[%c0_20, %c0_21] : memref<8x1xf32, #tpu.memory_space<vmem>>, vector<8x1xf32>
    %cst_22 = arith.constant dense<0.000000e+00> : vector<8x128xf32>
    %24 = tpu.matmul %22, %21, %cst_22 {dimension_numbers = #tpu.dot_dimension_numbers<[1], [0], [0], [1], [0, 0, 1, 1], [], []>} : vector<8x32xf32>, vector<32x128xf32>, vector<8x128xf32> -> vector<8x128xf32>
    %25 = vector.broadcast %23 : vector<8x1xf32> to vector<8x128xf32>
    %26 = arith.addf %24, %25 : vector<8x128xf32>
    %c0_23 = arith.constant 0 : index
    %c0_24 = arith.constant 0 : index
    %27 = vector.load %arg10[%c0_23, %c0_24] : memref<8x128xf32, #tpu.memory_space<vmem>>, vector<8x128xf32>
    tpu.vector_store %arg10[%c0_23, %c0_24], %26 {strides = array<i32>} : memref<8x128xf32, #tpu.memory_space<vmem>>, vector<8x128xf32>,
    return
  }
  func.func @transform_0(%arg0: i32) -> (i32, i32) {
    %c0_i32 = arith.constant 0 : i32
    %c0_i32_0 = arith.constant 0 : i32
    return %arg0, %c0_i32 : i32, i32
  }
  func.func @transform_1(%arg0: i32) -> (i32, i32) {
    %c0_i32 = arith.constant 0 : i32
    %c0_i32_0 = arith.constant 0 : i32
    %c0_i32_1 = arith.constant 0 : i32
    return %c0_i32, %c0_i32_0 : i32, i32
  }
  func.func @transform_2(%arg0: i32) -> (i32, i32) {
    %c0_i32 = arith.constant 0 : i32
    %c0_i32_0 = arith.constant 0 : i32
    %c0_i32_1 = arith.constant 0 : i32
    return %c0_i32, %c0_i32_0 : i32, i32
  }
  func.func @transform_3(%arg0: i32) -> (i32, i32) {
    %c0_i32 = arith.constant 0 : i32
    %c0_i32_0 = arith.constant 0 : i32
    %c0_i32_1 = arith.constant 0 : i32
    return %c0_i32, %c0_i32_0 : i32, i32
  }
  func.func @transform_4(%arg0: i32) -> (i32, i32) {
    %c0_i32 = arith.constant 0 : i32
    %c0_i32_0 = arith.constant 0 : i32
    %c0_i32_1 = arith.constant 0 : i32
    return %c0_i32, %c0_i32_0 : i32, i32
  }
  func.func @transform_5(%arg0: i32) -> (i32, i32) {
    %c0_i32 = arith.constant 0 : i32
    %c0_i32_0 = arith.constant 0 : i32
    %c0_i32_1 = arith.constant 0 : i32
    return %c0_i32, %c0_i32_0 : i32, i32
  }
  func.func @transform_6(%arg0: i32) -> (i32, i32) {
    %c0_i32 = arith.constant 0 : i32
    %c0_i32_0 = arith.constant 0 : i32
    %c0_i32_1 = arith.constant 0 : i32
    return %c0_i32, %c0_i32_0 : i32, i32
  }
  func.func @transform_7(%arg0: i32) -> (i32, i32) {
    %c0_i32 = arith.constant 0 : i32
    %c0_i32_0 = arith.constant 0 : i32
    %c0_i32_1 = arith.constant 0 : i32
    return %c0_i32, %c0_i32_0 : i32, i32
  }
  func.func @transform_8(%arg0: i32) -> (i32, i32) {
    %c0_i32 = arith.constant 0 : i32
    %c0_i32_0 = arith.constant 0 : i32
    %c0_i32_1 = arith.constant 0 : i32
    return %c0_i32, %c0_i32_0 : i32, i32
  }
  func.func @transform_9(%arg0: i32) -> (i32, i32) {
    %c0_i32 = arith.constant 0 : i32
    %c0_i32_0 = arith.constant 0 : i32
    return %c0_i32, %arg0 : i32, i32
  }
}

</mosaic_0001>

<llo_original>
// kernel: tpu_custom_call.1
$region0: #{tpu_custom_call.1}
  #allocation0 [shape = 'u32[]', space=smem, size = 0x4, offset = 0x4, fixed_abs, tag = 'smem constant byte address 0x4 - core index']
  #allocation1 [shape = 'u32[72,128]{1,0:T(1,128)}', space=vmem, size = 0x9000, scoped, tag = 'internal scratch']
  %s0 = inlined_call_operand.vmem [shape: f32[128,16], index: 0, kind: input, shape index: {}]
  %s1 = inlined_call_operand.vmem [shape: f32[32,16], index: 1, kind: input, shape index: {}]
  %s2 = inlined_call_operand.vmem [shape: f32[32,1], index: 2, kind: input, shape index: {}]
  %s3 = inlined_call_operand.vmem [shape: f32[32,32], index: 3, kind: input, shape index: {}]
  %s4 = inlined_call_operand.vmem [shape: f32[32,1], index: 4, kind: input, shape index: {}]
  %s5 = inlined_call_operand.vmem [shape: f32[32,32], index: 5, kind: input, shape index: {}]
  %s6 = inlined_call_operand.vmem [shape: f32[32,1], index: 6, kind: input, shape index: {}]
  %s7 = inlined_call_operand.vmem [shape: f32[8,32], index: 7, kind: input, shape index: {}]
  %s8 = inlined_call_operand.vmem [shape: f32[8,1], index: 8, kind: input, shape index: {}]
  %s9 = inlined_call_operand.hbm [shape: f32[8,128], index: 9, kind: output, shape index: {}]
  %s10 = sld [smem:[#allocation0]]
  $region46: #{tpu_custom_call.1} parent=0
    _
  %s12 = ssub.s32 1, %s10
  %s13 = scalar_select 0, %s12, %s10
  $region1: #{tpu_custom_call.1} parent=0
    #allocation2 [shape = 'u8[4096]{0}', space=vmem, size = 0x1000, scoped, tag = 'output window, operand 0, single buffered']
    #allocation3 [shape = 's32[1]{0}', space=sflag, size = 0x4, scoped, tag = 'scoped memory for tpu_custom_call.1']
    %14 = vsyncpa [#allocation3], 0
    // Predicated region
    $region2: #{tpu_custom_call.1} parent=1 // pred_check
      _
    $region3: #{tpu_custom_call.1} parent=1 // pred_check_branch
      %16 = sbr.rel (0) target = $region5
    $region4: #{tpu_custom_call.1} parent=1 // pred_region
      _
    $region5: #{tpu_custom_call.1} parent=1 // pred_fallthru
      _
    // Predicated region
    $region6: #{tpu_custom_call.1} parent=1 // pred_check
      _
    $region7: #{tpu_custom_call.1} parent=1 // pred_check_branch
      %18 = sbr.rel (0) target = $region9
    $region8: #{tpu_custom_call.1} parent=1 // pred_region
      _
    $region9: #{tpu_custom_call.1} parent=1 // pred_fallthru
      _
    // Predicated region
    $region10: #{tpu_custom_call.1} parent=1 // pred_check
      _
    $region11: #{tpu_custom_call.1} parent=1 // pred_check_branch
      %20 = sbr.rel (0) target = $region13
    $region12: #{tpu_custom_call.1} parent=1 // pred_region
      _
    $region13: #{tpu_custom_call.1} parent=1 // pred_fallthru
      _
    // Predicated region
    $region14: #{tpu_custom_call.1} parent=1 // pred_check
      _
    $region15: #{tpu_custom_call.1} parent=1 // pred_check_branch
      %22 = sbr.rel (0) target = $region17
    $region16: #{tpu_custom_call.1} parent=1 // pred_region
      _
    $region17: #{tpu_custom_call.1} parent=1 // pred_fallthru
      _
    // Predicated region
    $region18: #{tpu_custom_call.1} parent=1 // pred_check
      _
    $region19: #{tpu_custom_call.1} parent=1 // pred_check_branch
      %24 = sbr.rel (0) target = $region21
    $region20: #{tpu_custom_call.1} parent=1 // pred_region
      _
    $region21: #{tpu_custom_call.1} parent=1 // pred_fallthru
      _
    // Predicated region
    $region22: #{tpu_custom_call.1} parent=1 // pred_check
      _
    $region23: #{tpu_custom_call.1} parent=1 // pred_check_branch
      %26 = sbr.rel (0) target = $region25
    $region24: #{tpu_custom_call.1} parent=1 // pred_region
      _
    $region25: #{tpu_custom_call.1} parent=1 // pred_fallthru
      _
    // Predicated region
    $region26: #{tpu_custom_call.1} parent=1 // pred_check
      _
    $region27: #{tpu_custom_call.1} parent=1 // pred_check_branch
      %28 = sbr.rel (0) target = $region29
    $region28: #{tpu_custom_call.1} parent=1 // pred_region
      _
    $region29: #{tpu_custom_call.1} parent=1 // pred_fallthru
      _
    // Predicated region
    $region30: #{tpu_custom_call.1} parent=1 // pred_check
      _
    $region31: #{tpu_custom_call.1} parent=1 // pred_check_branch
      %30 = sbr.rel (0) target = $region33
    $region32: #{tpu_custom_call.1} parent=1 // pred_region
      _
    $region33: #{tpu_custom_call.1} parent=1 // pred_fallthru
      _
    // Predicated region
    $region34: #{tpu_custom_call.1} parent=1 // pred_check
      _
    $region35: #{tpu_custom_call.1} parent=1 // pred_check_branch
      %32 = sbr.rel (0) target = $region37
    $region36: #{tpu_custom_call.1} parent=1 // pred_region
      _
    $region37: #{tpu_custom_call.1} parent=1 // pred_fallthru
      _
    %v33 = vld [vmem:[%s0] sm:$0xff]
    %v34 = vld [vmem:[%s0 + $0x8] sm:$0xff]
    %v35 = vld [vmem:[%s0 + $0x10] sm:$0xff]
    %v36 = vld [vmem:[%s0 + $0x18] sm:$0xff]
    %v37 = vld [vmem:[%s0 + $0x20] sm:$0xff]
    %v38 = vld [vmem:[%s0 + $0x28] sm:$0xff]
    %v39 = vld [vmem:[%s0 + $0x30] sm:$0xff]
    %v40 = vld [vmem:[%s0 + $0x38] sm:$0xff]
    %v41 = vld [vmem:[%s0 + $0x40] sm:$0xff]
    %v42 = vld [vmem:[%s0 + $0x48] sm:$0xff]
    %v43 = vld [vmem:[%s0 + $0x50] sm:$0xff]
    %v44 = vld [vmem:[%s0 + $0x58] sm:$0xff]
    %v45 = vld [vmem:[%s0 + $0x60] sm:$0xff]
    %v46 = vld [vmem:[%s0 + $0x68] sm:$0xff]
    %v47 = vld [vmem:[%s0 + $0x70] sm:$0xff]
    %v48 = vld [vmem:[%s0 + $0x78] sm:$0xff]
    %v49 = vld [vmem:[%s1] sm:$0xff]
    %v50 = vld [vmem:[%s1 + $0x8] sm:$0xff]
    %v51 = vld [vmem:[%s1 + $0x10] sm:$0xff]
    %v52 = vld [vmem:[%s1 + $0x18] sm:$0xff]
    %v53 = vld [vmem:[%s2] sm:$0xff]
    %v54 = vld [vmem:[%s2 + $0x8] sm:$0xff]
    %v55 = vld [vmem:[%s2 + $0x10] sm:$0xff]
    %v56 = vld [vmem:[%s2 + $0x18] sm:$0xff]
    %58 = vset.pattern.permute.xlu0 0
    %59 = vperm.xlu0 %58, %v53
    %v60 = vpop.permute.xlu0 %59
    %63 = vset.pattern.permute.xlu0 0
    %64 = vperm.xlu0 %63, %v54
    %v65 = vpop.permute.xlu0 %64
    %68 = vset.pattern.permute.xlu0 0
    %69 = vperm.xlu0 %68, %v55
    %v70 = vpop.permute.xlu0 %69
    %73 = vset.pattern.permute.xlu0 0
    %74 = vperm.xlu0 %73, %v56
    %v75 = vpop.permute.xlu0 %74
    %vm77 = vcmask 130048
    %v79 = vsel %vm77, %v49, 0
    %v82 = vsel %vm77, %v50, 0
    %v85 = vsel %vm77, %v51, 0
    %v88 = vsel %vm77, %v52, 0
    %v91 = vsel %vm77, %v33, 0
    %v94 = vsel %vm77, %v34, 0
    %v97 = vsel %vm77, %v35, 0
    %v100 = vsel %vm77, %v36, 0
    %v103 = vsel %vm77, %v37, 0
    %v106 = vsel %vm77, %v38, 0
    %v109 = vsel %vm77, %v39, 0
    %v112 = vsel %vm77, %v40, 0
    %v115 = vsel %vm77, %v41, 0
    %v118 = vsel %vm77, %v42, 0
    %v121 = vsel %vm77, %v43, 0
    %v124 = vsel %vm77, %v44, 0
    %v127 = vsel %vm77, %v45, 0
    %v130 = vsel %vm77, %v46, 0
    %v133 = vsel %vm77, %v47, 0
    %v136 = vsel %vm77, %v48, 0
    %138 = vmatpush.xpose.msra.mxu0 %v136
    %139 = vmatpush.xpose.msra.mxu0 %v133
    %140 = vmatpush.xpose.msra.mxu0 %v130
    %141 = vmatpush.xpose.msra.mxu0 %v127
    %142 = vmatpush.xpose.msra.mxu0 %v124
    %143 = vmatpush.xpose.msra.mxu0 %v121
    %144 = vmatpush.xpose.msra.mxu0 %v118
    %145 = vmatpush.xpose.msra.mxu0 %v115
    %146 = vmatpush.xpose.msra.mxu0 %v112
    %147 = vmatpush.xpose.msra.mxu0 %v109
    %148 = vmatpush.xpose.msra.mxu0 %v106
    %149 = vmatpush.xpose.msra.mxu0 %v103
    %150 = vmatpush.xpose.msra.mxu0 %v100
    %151 = vmatpush.xpose.msra.mxu0 %v97
    %152 = vmatpush.xpose.msra.mxu0 %v94
    %153 = vmatpush.xpose.msra.mxu0 %v91
    %154 = vmatmul.f32.gmra.mxu0 %v79
    %v155 = vpop.f32.mrf.mxu0
    %v156 = vadd.f32 %v60, %v155
    %157 = vmatmul.f32.gmra.mxu0 %v82
    %v158 = vpop.f32.mrf.mxu0
    %v159 = vadd.f32 %v65, %v158
    %160 = vmatmul.f32.gmra.mxu0 %v85
    %v161 = vpop.f32.mrf.mxu0
    %v162 = vadd.f32 %v70, %v161
    %163 = vmatmul.f32.gmra.mxu0 %v88
    %v164 = vpop.f32.mrf.mxu0
    %v165 = vadd.f32 %v75, %v164
    %166 = vdwg.mxu0
    %v167 = vmax.f32 %v156, 0.0
    %v168 = vmax.f32 %v159, 0.0
    %v169 = vmax.f32 %v162, 0.0
    %v170 = vmax.f32 %v165, 0.0
    %v171 = vld [vmem:[%s3] sm:$0xff]
    %v172 = vld [vmem:[%s3 + $0x8] sm:$0xff]
    %v173 = vld [vmem:[%s3 + $0x10] sm:$0xff]
    %v174 = vld [vmem:[%s3 + $0x18] sm:$0xff]
    %v175 = vld [vmem:[%s4] sm:$0xff]
    %v176 = vld [vmem:[%s4 + $0x8] sm:$0xff]
    %v177 = vld [vmem:[%s4 + $0x10] sm:$0xff]
    %v178 = vld [vmem:[%s4 + $0x18] sm:$0xff]
    %180 = vset.pattern.permute.xlu0 0
    %181 = vperm.xlu0 %180, %v175
    %v182 = vpop.permute.xlu0 %181
    %185 = vset.pattern.permute.xlu0 0
    %186 = vperm.xlu0 %185, %v176
    %v187 = vpop.permute.xlu0 %186
    %190 = vset.pattern.permute.xlu0 0
    %191 = vperm.xlu0 %190, %v177
    %v192 = vpop.permute.xlu0 %191
    %195 = vset.pattern.permute.xlu0 0
    %196 = vperm.xlu0 %195, %v178
    %v197 = vpop.permute.xlu0 %196
    %vm199 = vcmask 261120
    %v201 = vsel %vm199, %v171, 0
    %v204 = vsel %vm199, %v172, 0
    %v207 = vsel %vm199, %v173, 0
    %v210 = vsel %vm199, %v174, 0
    %212 = vmatpush.msra.mxu0 0.0
    %213 = vmatpush.msra.mxu0 0.0
    %214 = vmatpush.msra.mxu0 0.0
    %215 = vmatpush.msra.mxu0 0.0
    %216 = vmatpush.msra.mxu0 0.0
    %217 = vmatpush.msra.mxu0 0.0
    %218 = vmatpush.msra.mxu0 0.0
    %219 = vmatpush.msra.mxu0 0.0
    %220 = vmatpush.msra.mxu0 0.0
    %221 = vmatpush.msra.mxu0 0.0
    %222 = vmatpush.msra.mxu0 0.0
    %223 = vmatpush.msra.mxu0 0.0
    %224 = vmatpush.msra.mxu0 %v170
    %225 = vmatpush.msra.mxu0 %v169
    %226 = vmatpush.msra.mxu0 %v168
    %227 = vmatpush.msra.mxu0 %v167
    %228 = vmatmul.f32.gmra.mxu0 %v201
    %v229 = vpop.f32.mrf.mxu0
    %v230 = vadd.f32 %v182, %v229
    %231 = vmatmul.f32.gmra.mxu0 %v204
    %v232 = vpop.f32.mrf.mxu0
    %v233 = vadd.f32 %v187, %v232
    %234 = vmatmul.f32.gmra.mxu0 %v207
    %v235 = vpop.f32.mrf.mxu0
    %v236 = vadd.f32 %v192, %v235
    %237 = vmatmul.f32.gmra.mxu0 %v210
    %v238 = vpop.f32.mrf.mxu0
    %v239 = vadd.f32 %v197, %v238
    %240 = vdwg.mxu0
    %v241 = vmax.f32 %v230, 0.0
    %v242 = vmax.f32 %v233, 0.0
    %v243 = vmax.f32 %v236, 0.0
    %v244 = vmax.f32 %v239, 0.0
    %v245 = vld [vmem:[%s5] sm:$0xff]
    %v246 = vld [vmem:[%s5 + $0x8] sm:$0xff]
    %v247 = vld [vmem:[%s5 + $0x10] sm:$0xff]
    %v248 = vld [vmem:[%s5 + $0x18] sm:$0xff]
    %v249 = vld [vmem:[%s6] sm:$0xff]
    %v250 = vld [vmem:[%s6 + $0x8] sm:$0xff]
    %v251 = vld [vmem:[%s6 + $0x10] sm:$0xff]
    %v252 = vld [vmem:[%s6 + $0x18] sm:$0xff]
    %254 = vset.pattern.permute.xlu0 0
    %255 = vperm.xlu0 %254, %v249
    %v256 = vpop.permute.xlu0 %255
    %259 = vset.pattern.permute.xlu0 0
    %260 = vperm.xlu0 %259, %v250
    %v261 = vpop.permute.xlu0 %260
    %264 = vset.pattern.permute.xlu0 0
    %265 = vperm.xlu0 %264, %v251
    %v266 = vpop.permute.xlu0 %265
    %269 = vset.pattern.permute.xlu0 0
    %270 = vperm.xlu0 %269, %v252
    %v271 = vpop.permute.xlu0 %270
    %v274 = vsel %vm199, %v245, 0
    %v277 = vsel %vm199, %v246, 0
    %v280 = vsel %vm199, %v247, 0
    %v283 = vsel %vm199, %v248, 0
    %285 = vmatpush.msra.mxu0 0.0
    %286 = vmatpush.msra.mxu0 0.0
    %287 = vmatpush.msra.mxu0 0.0
    %288 = vmatpush.msra.mxu0 0.0
    %289 = vmatpush.msra.mxu0 0.0
    %290 = vmatpush.msra.mxu0 0.0
    %291 = vmatpush.msra.mxu0 0.0
    %292 = vmatpush.msra.mxu0 0.0
    %293 = vmatpush.msra.mxu0 0.0
    %294 = vmatpush.msra.mxu0 0.0
    %295 = vmatpush.msra.mxu0 0.0
    %296 = vmatpush.msra.mxu0 0.0
    %297 = vmatpush.msra.mxu0 %v244
    %298 = vmatpush.msra.mxu0 %v243
    %299 = vmatpush.msra.mxu0 %v242
    %300 = vmatpush.msra.mxu0 %v241
    %301 = vmatmul.f32.gmra.mxu0 %v274
    %v302 = vpop.f32.mrf.mxu0
    %v303 = vadd.f32 %v256, %v302
    %304 = vmatmul.f32.gmra.mxu0 %v277
    %v305 = vpop.f32.mrf.mxu0
    %v306 = vadd.f32 %v261, %v305
    %307 = vmatmul.f32.gmra.mxu0 %v280
    %v308 = vpop.f32.mrf.mxu0
    %v309 = vadd.f32 %v266, %v308
    %310 = vmatmul.f32.gmra.mxu0 %v283
    %v311 = vpop.f32.mrf.mxu0
    %v312 = vadd.f32 %v271, %v311
    %313 = vdwg.mxu0
    %v314 = vmax.f32 %v303, 0.0
    %v315 = vmax.f32 %v306, 0.0
    %v316 = vmax.f32 %v309, 0.0
    %v317 = vmax.f32 %v312, 0.0
    %v318 = vld [vmem:[%s7] sm:$0xff]
    %v319 = vld [vmem:[%s8] sm:$0xff]
    %321 = vset.pattern.permute.xlu0 0
    %322 = vperm.xlu0 %321, %v319
    %v323 = vpop.permute.xlu0 %322
    %v326 = vsel %vm199, %v318, 0
    %328 = vmatpush.msra.mxu0 0.0
    %329 = vmatpush.msra.mxu0 0.0
    %330 = vmatpush.msra.mxu0 0.0
    %331 = vmatpush.msra.mxu0 0.0
    %332 = vmatpush.msra.mxu0 0.0
    %333 = vmatpush.msra.mxu0 0.0
    %334 = vmatpush.msra.mxu0 0.0
    %335 = vmatpush.msra.mxu0 0.0
    %336 = vmatpush.msra.mxu0 0.0
    %337 = vmatpush.msra.mxu0 0.0
    %338 = vmatpush.msra.mxu0 0.0
    %339 = vmatpush.msra.mxu0 0.0
    %340 = vmatpush.msra.mxu0 %v317
    %341 = vmatpush.msra.mxu0 %v316
    %342 = vmatpush.msra.mxu0 %v315
    %343 = vmatpush.msra.mxu0 %v314
    %344 = vmatmul.f32.gmra.mxu0 %v326
    %v345 = vpop.f32.mrf.mxu0
    %v346 = vadd.f32 %v323, %v345
    %347 = vdwg.mxu0
    %348 = vst [vmem:[#allocation2] sm:$0xff] %v346
    // Predicated region
    $region38: #{tpu_custom_call.1} parent=1 // pred_check
      _
    $region39: #{tpu_custom_call.1} parent=1 // pred_check_branch
      %350 = sbr.rel (0) target = $region41
    $region40: #{tpu_custom_call.1} parent=1 // pred_region
      %352 = vsyncadd [#allocation3], 0
      %s354 = sshll.u32 [#allocation2], 4
      %s355 = int_to_ptr.vmem [resolvable:$true] %s354
      %s356 = sshll.u32 %s9, 4
      %s357 = int_to_ptr.hbm [resolvable:$true] %s356
      %359 = dma.vmem_to_hbm [thread:$0]  %s355, 128, %s357, [#allocation3]
    $region41: #{tpu_custom_call.1} parent=1 // pred_fallthru
      _
    // Predicated region
    $region42: #{tpu_custom_call.1} parent=1 // pred_check
      _
    $region43: #{tpu_custom_call.1} parent=1 // pred_check_branch
      %361 = sbr.rel (0) target = $region45
    $region44: #{tpu_custom_call.1} parent=1 // pred_region
      %363 = dma.done [#allocation3], 128
    $region45: #{tpu_custom_call.1} parent=1 // pred_fallthru
      _
    %364 = vsyncpa [#allocation3], 1

// kernel: tpu_custom_call.1
$region0: #{tpu_custom_call.1}
  #allocation0 [shape = 'u32[]', space=smem, size = 0x4, offset = 0x4, fixed_abs, tag = 'smem constant byte address 0x4 - core index']
  #allocation1 [shape = 'u32[72,128]{1,0:T(1,128)}', space=vmem, size = 0x9000, scoped, tag = 'internal scratch']
  %s0 = inlined_call_operand.vmem [shape: f32[128,16], index: 0, kind: input, shape index: {}]
  %s1 = inlined_call_operand.vmem [shape: f32[32,16], index: 1, kind: input, shape index: {}]
  %s2 = inlined_call_operand.vmem [shape: f32[32,1], index: 2, kind: input, shape index: {}]
  %s3 = inlined_call_operand.vmem [shape: f32[32,32], index: 3, kind: input, shape index: {}]
  %s4 = inlined_call_operand.vmem [shape: f32[32,1], index: 4, kind: input, shape index: {}]
  %s5 = inlined_call_operand.vmem [shape: f32[32,32], index: 5, kind: input, shape index: {}]
  %s6 = inlined_call_operand.vmem [shape: f32[32,1], index: 6, kind: input, shape index: {}]
  %s7 = inlined_call_operand.vmem [shape: f32[8,32], index: 7, kind: input, shape index: {}]
  %s8 = inlined_call_operand.vmem [shape: f32[8,1], index: 8, kind: input, shape index: {}]
  %s9 = inlined_call_operand.hbm [shape: f32[8,128], index: 9, kind: output, shape index: {}]
  %s10 = sld [smem:[#allocation0]]
  $region46: #{tpu_custom_call.1} parent=0
    _
  %s12 = ssub.s32 1, %s10
  %s13 = scalar_select 0, %s12, %s10
  $region1: #{tpu_custom_call.1} parent=0
    #allocation2 [shape = 'u8[4096]{0}', space=vmem, size = 0x1000, scoped, tag = 'output window, operand 0, single buffered']
    #allocation3 [shape = 's32[1]{0}', space=sflag, size = 0x4, scoped, tag = 'scoped memory for tpu_custom_call.1']
    %14 = vsyncpa [#allocation3], 0
    // Predicated region
    $region2: #{tpu_custom_call.1} parent=1 // pred_check
      _
    $region3: #{tpu_custom_call.1} parent=1 // pred_check_branch
      %16 = sbr.rel (0) target = $region5
    $region4: #{tpu_custom_call.1} parent=1 // pred_region
      _
    $region5: #{tpu_custom_call.1} parent=1 // pred_fallthru
      _
    // Predicated region
    $region6: #{tpu_custom_call.1} parent=1 // pred_check
      _
    $region7: #{tpu_custom_call.1} parent=1 // pred_check_branch
      %18 = sbr.rel (0) target = $region9
    $region8: #{tpu_custom_call.1} parent=1 // pred_region
      _
    $region9: #{tpu_custom_call.1} parent=1 // pred_fallthru
      _
    // Predicated region
    $region10: #{tpu_custom_call.1} parent=1 // pred_check
      _
    $region11: #{tpu_custom_call.1} parent=1 // pred_check_branch
      %20 = sbr.rel (0) target = $region13
    $region12: #{tpu_custom_call.1} parent=1 // pred_region
      _
    $region13: #{tpu_custom_call.1} parent=1 // pred_fallthru
      _
    // Predicated region
    $region14: #{tpu_custom_call.1} parent=1 // pred_check
      _
    $region15: #{tpu_custom_call.1} parent=1 // pred_check_branch
      %22 = sbr.rel (0) target = $region17
    $region16: #{tpu_custom_call.1} parent=1 // pred_region
      _
    $region17: #{tpu_custom_call.1} parent=1 // pred_fallthru
      _
    // Predicated region
    $region18: #{tpu_custom_call.1} parent=1 // pred_check
      _
    $region19: #{tpu_custom_call.1} parent=1 // pred_check_branch
      %24 = sbr.rel (0) target = $region21
    $region20: #{tpu_custom_call.1} parent=1 // pred_region
      _
    $region21: #{tpu_custom_call.1} parent=1 // pred_fallthru
      _
    // Predicated region
    $region22: #{tpu_custom_call.1} parent=1 // pred_check
      _
    $region23: #{tpu_custom_call.1} parent=1 // pred_check_branch
      %26 = sbr.rel (0) target = $region25
    $region24: #{tpu_custom_call.1} parent=1 // pred_region
      _
    $region25: #{tpu_custom_call.1} parent=1 // pred_fallthru
      _
    // Predicated region
    $region26: #{tpu_custom_call.1} parent=1 // pred_check
      _
    $region27: #{tpu_custom_call.1} parent=1 // pred_check_branch
      %28 = sbr.rel (0) target = $region29
    $region28: #{tpu_custom_call.1} parent=1 // pred_region
      _
    $region29: #{tpu_custom_call.1} parent=1 // pred_fallthru
      _
    // Predicated region
    $region30: #{tpu_custom_call.1} parent=1 // pred_check
      _
    $region31: #{tpu_custom_call.1} parent=1 // pred_check_branch
      %30 = sbr.rel (0) target = $region33
    $region32: #{tpu_custom_call.1} parent=1 // pred_region
      _
    $region33: #{tpu_custom_call.1} parent=1 // pred_fallthru
      _
    // Predicated region
    $region34: #{tpu_custom_call.1} parent=1 // pred_check
      _
    $region35: #{tpu_custom_call.1} parent=1 // pred_check_branch
      %32 = sbr.rel (0) target = $region37
    $region36: #{tpu_custom_call.1} parent=1 // pred_region
      _
    $region37: #{tpu_custom_call.1} parent=1 // pred_fallthru
      _
    %v33 = vld [vmem:[%s0] sm:$0xff]
    %v34 = vld [vmem:[%s0 + $0x8] sm:$0xff]
    %v35 = vld [vmem:[%s0 + $0x10] sm:$0xff]
    %v36 = vld [vmem:[%s0 + $0x18] sm:$0xff]
    %v37 = vld [vmem:[%s0 + $0x20] sm:$0xff]
    %v38 = vld [vmem:[%s0 + $0x28] sm:$0xff]
    %v39 = vld [vmem:[%s0 + $0x30] sm:$0xff]
    %v40 = vld [vmem:[%s0 + $0x38] sm:$0xff]
    %v41 = vld [vmem:[%s0 + $0x40] sm:$0xff]
    %v42 = vld [vmem:[%s0 + $0x48] sm:$0xff]
    %v43 = vld [vmem:[%s0 + $0x50] sm:$0xff]
    %v44 = vld [vmem:[%s0 + $0x58] sm:$0xff]
    %v45 = vld [vmem:[%s0 + $0x60] sm:$0xff]
    %v46 = vld [vmem:[%s0 + $0x68] sm:$0xff]
    %v47 = vld [vmem:[%s0 + $0x70] sm:$0xff]
    %v48 = vld [vmem:[%s0 + $0x78] sm:$0xff]
    %v49 = vld [vmem:[%s1] sm:$0xff]
    %v50 = vld [vmem:[%s1 + $0x8] sm:$0xff]
    %v51 = vld [vmem:[%s1 + $0x10] sm:$0xff]
    %v52 = vld [vmem:[%s1 + $0x18] sm:$0xff]
    %v53 = vld [vmem:[%s2] sm:$0xff]
    %v54 = vld [vmem:[%s2 + $0x8] sm:$0xff]
    %v55 = vld [vmem:[%s2 + $0x10] sm:$0xff]
    %v56 = vld [vmem:[%s2 + $0x18] sm:$0xff]
    %58 = vset.pattern.permute.xlu0 0
    %59 = vperm.xlu0 %58, %v53
    %v60 = vpop.permute.xlu0 %59
    %63 = vset.pattern.permute.xlu0 0
    %64 = vperm.xlu0 %63, %v54
    %v65 = vpop.permute.xlu0 %64
    %68 = vset.pattern.permute.xlu0 0
    %69 = vperm.xlu0 %68, %v55
    %v70 = vpop.permute.xlu0 %69
    %73 = vset.pattern.permute.xlu0 0
    %74 = vperm.xlu0 %73, %v56
    %v75 = vpop.permute.xlu0 %74
    %vm77 = vcmask 130048
    %v79 = vsel %vm77, %v49, 0
    %v82 = vsel %vm77, %v50, 0
    %v85 = vsel %vm77, %v51, 0
    %v88 = vsel %vm77, %v52, 0
    %v91 = vsel %vm77, %v33, 0
    %v94 = vsel %vm77, %v34, 0
    %v97 = vsel %vm77, %v35, 0
    %v100 = vsel %vm77, %v36, 0
    %v103 = vsel %vm77, %v37, 0
    %v106 = vsel %vm77, %v38, 0
    %v109 = vsel %vm77, %v39, 0
    %v112 = vsel %vm77, %v40, 0
    %v115 = vsel %vm77, %v41, 0
    %v118 = vsel %vm77, %v42, 0
    %v121 = vsel %vm77, %v43, 0
    %v124 = vsel %vm77, %v44, 0
    %v127 = vsel %vm77, %v45, 0
    %v130 = vsel %vm77, %v46, 0
    %v133 = vsel %vm77, %v47, 0
    %v136 = vsel %vm77, %v48, 0
    %138 = vmatpush.xpose.msra.mxu0 %v136
    %139 = vmatpush.xpose.msra.mxu0 %v133
    %140 = vmatpush.xpose.msra.mxu0 %v130
    %141 = vmatpush.xpose.msra.mxu0 %v127
    %142 = vmatpush.xpose.msra.mxu0 %v124
    %143 = vmatpush.xpose.msra.mxu0 %v121
    %144 = vmatpush.xpose.msra.mxu0 %v118
    %145 = vmatpush.xpose.msra.mxu0 %v115
    %146 = vmatpush.xpose.msra.mxu0 %v112
    %147 = vmatpush.xpose.msra.mxu0 %v109
    %148 = vmatpush.xpose.msra.mxu0 %v106
    %149 = vmatpush.xpose.msra.mxu0 %v103
    %150 = vmatpush.xpose.msra.mxu0 %v100
    %151 = vmatpush.xpose.msra.mxu0 %v97
    %152 = vmatpush.xpose.msra.mxu0 %v94
    %153 = vmatpush.xpose.msra.mxu0 %v91
    %154 = vmatmul.f32.gmra.mxu0 %v79
    %v155 = vpop.f32.mrf.mxu0
    %v156 = vadd.f32 %v60, %v155
    %157 = vmatmul.f32.gmra.mxu0 %v82
    %v158 = vpop.f32.mrf.mxu0
    %v159 = vadd.f32 %v65, %v158
    %160 = vmatmul.f32.gmra.mxu0 %v85
    %v161 = vpop.f32.mrf.mxu0
    %v162 = vadd.f32 %v70, %v161
    %163 = vmatmul.f32.gmra.mxu0 %v88
    %v164 = vpop.f32.mrf.mxu0
    %v165 = vadd.f32 %v75, %v164
    %166 = vdwg.mxu0
    %v167 = vmax.f32 %v156, 0.0
    %v168 = vmax.f32 %v159, 0.0
    %v169 = vmax.f32 %v162, 0.0
    %v170 = vmax.f32 %v165, 0.0
    %v171 = vld [vmem:[%s3] sm:$0xff]
    %v172 = vld [vmem:[%s3 + $0x8] sm:$0xff]
    %v173 = vld [vmem:[%s3 + $0x10] sm:$0xff]
    %v174 = vld [vmem:[%s3 + $0x18] sm:$0xff]
    %v175 = vld [vmem:[%s4] sm:$0xff]
    %v176 = vld [vmem:[%s4 + $0x8] sm:$0xff]
    %v177 = vld [vmem:[%s4 + $0x10] sm:$0xff]
    %v178 = vld [vmem:[%s4 + $0x18] sm:$0xff]
    %180 = vset.pattern.permute.xlu0 0
    %181 = vperm.xlu0 %180, %v175
    %v182 = vpop.permute.xlu0 %181
    %185 = vset.pattern.permute.xlu0 0
    %186 = vperm.xlu0 %185, %v176
    %v187 = vpop.permute.xlu0 %186
    %190 = vset.pattern.permute.xlu0 0
    %191 = vperm.xlu0 %190, %v177
    %v192 = vpop.permute.xlu0 %191
    %195 = vset.pattern.permute.xlu0 0
    %196 = vperm.xlu0 %195, %v178
    %v197 = vpop.permute.xlu0 %196
    %vm199 = vcmask 261120
    %v201 = vsel %vm199, %v171, 0
    %v204 = vsel %vm199, %v172, 0
    %v207 = vsel %vm199, %v173, 0
    %v210 = vsel %vm199, %v174, 0
    %212 = vmatpush.msra.mxu0 0.0
    %213 = vmatpush.msra.mxu0 0.0
    %214 = vmatpush.msra.mxu0 0.0
    %215 = vmatpush.msra.mxu0 0.0
    %216 = vmatpush.msra.mxu0 0.0
    %217 = vmatpush.msra.mxu0 0.0
    %218 = vmatpush.msra.mxu0 0.0
    %219 = vmatpush.msra.mxu0 0.0
    %220 = vmatpush.msra.mxu0 0.0
    %221 = vmatpush.msra.mxu0 0.0
    %222 = vmatpush.msra.mxu0 0.0
    %223 = vmatpush.msra.mxu0 0.0
    %224 = vmatpush.msra.mxu0 %v170
    %225 = vmatpush.msra.mxu0 %v169
    %226 = vmatpush.msra.mxu0 %v168
    %227 = vmatpush.msra.mxu0 %v167
    %228 = vmatmul.f32.gmra.mxu0 %v201
    %v229 = vpop.f32.mrf.mxu0
    %v230 = vadd.f32 %v182, %v229
    %231 = vmatmul.f32.gmra.mxu0 %v204
    %v232 = vpop.f32.mrf.mxu0
    %v233 = vadd.f32 %v187, %v232
    %234 = vmatmul.f32.gmra.mxu0 %v207
    %v235 = vpop.f32.mrf.mxu0
    %v236 = vadd.f32 %v192, %v235
    %237 = vmatmul.f32.gmra.mxu0 %v210
    %v238 = vpop.f32.mrf.mxu0
    %v239 = vadd.f32 %v197, %v238
    %240 = vdwg.mxu0
    %v241 = vmax.f32 %v230, 0.0
    %v242 = vmax.f32 %v233, 0.0
    %v243 = vmax.f32 %v236, 0.0
    %v244 = vmax.f32 %v239, 0.0
    %v245 = vld [vmem:[%s5] sm:$0xff]
    %v246 = vld [vmem:[%s5 + $0x8] sm:$0xff]
    %v247 = vld [vmem:[%s5 + $0x10] sm:$0xff]
    %v248 = vld [vmem:[%s5 + $0x18] sm:$0xff]
    %v249 = vld [vmem:[%s6] sm:$0xff]
    %v250 = vld [vmem:[%s6 + $0x8] sm:$0xff]
    %v251 = vld [vmem:[%s6 + $0x10] sm:$0xff]
    %v252 = vld [vmem:[%s6 + $0x18] sm:$0xff]
    %254 = vset.pattern.permute.xlu0 0
    %255 = vperm.xlu0 %254, %v249
    %v256 = vpop.permute.xlu0 %255
    %259 = vset.pattern.permute.xlu0 0
    %260 = vperm.xlu0 %259, %v250
    %v261 = vpop.permute.xlu0 %260
    %264 = vset.pattern.permute.xlu0 0
    %265 = vperm.xlu0 %264, %v251
    %v266 = vpop.permute.xlu0 %265
    %269 = vset.pattern.permute.xlu0 0
    %270 = vperm.xlu0 %269, %v252
    %v271 = vpop.permute.xlu0 %270
    %v274 = vsel %vm199, %v245, 0
    %v277 = vsel %vm199, %v246, 0
    %v280 = vsel %vm199, %v247, 0
    %v283 = vsel %vm199, %v248, 0
    %285 = vmatpush.msra.mxu0 0.0
    %286 = vmatpush.msra.mxu0 0.0
    %287 = vmatpush.msra.mxu0 0.0
    %288 = vmatpush.msra.mxu0 0.0
    %289 = vmatpush.msra.mxu0 0.0
    %290 = vmatpush.msra.mxu0 0.0
    %291 = vmatpush.msra.mxu0 0.0
    %292 = vmatpush.msra.mxu0 0.0
    %293 = vmatpush.msra.mxu0 0.0
    %294 = vmatpush.msra.mxu0 0.0
    %295 = vmatpush.msra.mxu0 0.0
    %296 = vmatpush.msra.mxu0 0.0
    %297 = vmatpush.msra.mxu0 %v244
    %298 = vmatpush.msra.mxu0 %v243
    %299 = vmatpush.msra.mxu0 %v242
    %300 = vmatpush.msra.mxu0 %v241
    %301 = vmatmul.f32.gmra.mxu0 %v274
    %v302 = vpop.f32.mrf.mxu0
    %v303 = vadd.f32 %v256, %v302
    %304 = vmatmul.f32.gmra.mxu0 %v277
    %v305 = vpop.f32.mrf.mxu0
    %v306 = vadd.f32 %v261, %v305
    %307 = vmatmul.f32.gmra.mxu0 %v280
    %v308 = vpop.f32.mrf.mxu0
    %v309 = vadd.f32 %v266, %v308
    %310 = vmatmul.f32.gmra.mxu0 %v283
    %v311 = vpop.f32.mrf.mxu0
    %v312 = vadd.f32 %v271, %v311
    %313 = vdwg.mxu0
    %v314 = vmax.f32 %v303, 0.0
    %v315 = vmax.f32 %v306, 0.0
    %v316 = vmax.f32 %v309, 0.0
    %v317 = vmax.f32 %v312, 0.0
    %v318 = vld [vmem:[%s7] sm:$0xff]
    %v319 = vld [vmem:[%s8] sm:$0xff]
    %321 = vset.pattern.permute.xlu0 0
    %322 = vperm.xlu0 %321, %v319
    %v323 = vpop.permute.xlu0 %322
    %v326 = vsel %vm199, %v318, 0
    %328 = vmatpush.msra.mxu0 0.0
    %329 = vmatpush.msra.mxu0 0.0
    %330 = vmatpush.msra.mxu0 0.0
    %331 = vmatpush.msra.mxu0 0.0
    %332 = vmatpush.msra.mxu0 0.0
    %333 = vmatpush.msra.mxu0 0.0
    %334 = vmatpush.msra.mxu0 0.0
    %335 = vmatpush.msra.mxu0 0.0
    %336 = vmatpush.msra.mxu0 0.0
    %337 = vmatpush.msra.mxu0 0.0
    %338 = vmatpush.msra.mxu0 0.0
    %339 = vmatpush.msra.mxu0 0.0
    %340 = vmatpush.msra.mxu0 %v317
    %341 = vmatpush.msra.mxu0 %v316
    %342 = vmatpush.msra.mxu0 %v315
    %343 = vmatpush.msra.mxu0 %v314
    %344 = vmatmul.f32.gmra.mxu0 %v326
    %v345 = vpop.f32.mrf.mxu0
    %v346 = vadd.f32 %v323, %v345
    %347 = vdwg.mxu0
    %348 = vst [vmem:[#allocation2] sm:$0xff] %v346
    // Predicated region
    $region38: #{tpu_custom_call.1} parent=1 // pred_check
      _
    $region39: #{tpu_custom_call.1} parent=1 // pred_check_branch
      %350 = sbr.rel (0) target = $region41
    $region40: #{tpu_custom_call.1} parent=1 // pred_region
      %352 = vsyncadd [#allocation3], 0
      %s354 = sshll.u32 [#allocation2], 4
      %s355 = int_to_ptr.vmem [resolvable:$true] %s354
      %s356 = sshll.u32 %s9, 4
      %s357 = int_to_ptr.hbm [resolvable:$true] %s356
      %359 = dma.vmem_to_hbm [thread:$0]  %s355, 128, %s357, [#allocation3]
    $region41: #{tpu_custom_call.1} parent=1 // pred_fallthru
      _
    // Predicated region
    $region42: #{tpu_custom_call.1} parent=1 // pred_check
      _
    $region43: #{tpu_custom_call.1} parent=1 // pred_check_branch
      %361 = sbr.rel (0) target = $region45
    $region44: #{tpu_custom_call.1} parent=1 // pred_region
      %363 = dma.done [#allocation3], 128
    $region45: #{tpu_custom_call.1} parent=1 // pred_fallthru
      _
    %364 = vsyncpa [#allocation3], 1

</llo_original>
